<compile_context>
chip_gen: v7x
topology: tpu7x:2x2x1
jax: 0.10.0
libtpu: 0.0.40
codegen_flags: <defaults>
</compile_context>

<pallas_src>
import functools

import jax
import jax.numpy as jnp
from jax import lax
from jax.experimental import pallas as pl
from jax.experimental.pallas import tpu as pltpu

EPS = 1e-6                       # timm ViT LayerNorm eps
VMEM_LIMIT = 48 * 1024 * 1024    # above default scoped limit, safe on v5e/v6e/v7x


# ----------------------------------------------------------------------------
# in-kernel helpers
# ----------------------------------------------------------------------------
def _layernorm(x, g, b):
    mu = jnp.mean(x, axis=-1, keepdims=True)
    var = jnp.mean((x - mu) ** 2, axis=-1, keepdims=True)
    return (x - mu) * lax.rsqrt(var + EPS) * g + b


# ----------------------------------------------------------------------------
# kernels
# ----------------------------------------------------------------------------
def patch_embed_kernel(p_ref, w_ref, b_ref, pos_ref, o_ref):
    # p_ref: (1, N, P) bf16   w_ref: (P, D) bf16   b_ref: (1, D) f32
    # pos_ref: (N, D) f32     o_ref: (1, N, D) f32
    tok = jnp.dot(p_ref[0], w_ref[...], preferred_element_type=jnp.float32)
    o_ref[0] = tok + b_ref[...] + pos_ref[...]


def block_kernel(x_ref, ln1g, ln1b, wqkv, bqkv, wproj, bproj,
                 ln2g, ln2b, wfc1, bfc1, wfc2, bfc2, fng, fnb,
                 o_ref, *, num_heads, final_norm):
    x = x_ref[0]                                   # (N, D) f32 residual stream
    N, D = x.shape
    hd = D // num_heads
    scale = 1.0 / float(hd) ** 0.5

    # ---- multi-head self-attention branch (pre-norm), heads batched ----
    h = _layernorm(x, ln1g[...], ln1b[...]).astype(jnp.bfloat16)
    qkv = jnp.dot(h, wqkv[...], preferred_element_type=jnp.float32) + bqkv[...]
    # fold 1/sqrt(hd) into q (N*hd muls instead of N*N on the score matrix)
    q = (qkv[:, :D] * scale).astype(jnp.bfloat16).reshape(N, num_heads, hd)
    k = qkv[:, D:2 * D].astype(jnp.bfloat16).reshape(N, num_heads, hd)
    v = qkv[:, 2 * D:].astype(jnp.bfloat16).reshape(N, num_heads, hd)

    s = jnp.einsum("nhd,mhd->hnm", q, k, preferred_element_type=jnp.float32)
    s = s - jnp.max(s, axis=-1, keepdims=True)
    e = jnp.exp(s)
    p = e * pl.reciprocal(jnp.sum(e, axis=-1, keepdims=True), approx=True)
    a = jnp.einsum("hnm,mhd->nhd", p.astype(jnp.bfloat16), v,
                   preferred_element_type=jnp.float32)
    a = a.reshape(N, D).astype(jnp.bfloat16)
    x = x + jnp.dot(a, wproj[...], preferred_element_type=jnp.float32) + bproj[...]

    # ---- MLP branch (pre-norm) ----
    h2 = _layernorm(x, ln2g[...], ln2b[...]).astype(jnp.bfloat16)
    m = jnp.dot(h2, wfc1[...], preferred_element_type=jnp.float32) + bfc1[...]
    m = jax.nn.gelu(m, approximate=False).astype(jnp.bfloat16)   # timm exact-erf GELU
    x = x + jnp.dot(m, wfc2[...], preferred_element_type=jnp.float32) + bfc2[...]

    if final_norm:                                 # fused self.vit.norm
        x = _layernorm(x, fng[...], fnb[...])
    o_ref[0] = x


def final_norm_kernel(x_ref, g_ref, b_ref, o_ref):
    # only used if depth == 0 (normally fused into the last block)
    o_ref[0] = _layernorm(x_ref[0], g_ref[...], b_ref[...])


# ----------------------------------------------------------------------------
# cost estimates
# ----------------------------------------------------------------------------
def _embed_cost(B, N, P, D):
    return pl.CostEstimate(
        flops=2 * B * N * P * D,
        transcendentals=0,
        bytes_accessed=B * N * P * 2 + P * D * 2 + (N * D + D) * 4 + B * N * D * 4)


def _block_cost(B, N, D, H, M):
    hd = D // H
    flops = B * (2 * N * D * 3 * D        # qkv
                 + 4 * H * N * N * hd     # qk^T + pv
                 + 2 * N * D * D          # proj
                 + 4 * N * D * M)         # fc1 + fc2
    trans = B * (H * N * N + N * M)       # exp + erf
    bytes_acc = (2 * B * N * D * 4                      # activations in/out f32
                 + 2 * (3 * D * D + D * D + 2 * D * M)  # bf16 weights
                 + 4 * (3 * D + D + M + 9 * D))         # f32 biases + LN params
    return pl.CostEstimate(flops=flops, transcendentals=trans,
                           bytes_accessed=bytes_acc)


# ----------------------------------------------------------------------------
# wrappers (pallas_call plumbing)
# ----------------------------------------------------------------------------
def _const_spec(shape):
    nd = len(shape)
    return pl.BlockSpec(shape, lambda b, _nd=nd: (0,) * _nd)


def run_patch_embed(patches, w, b, pos):
    B, N, P = patches.shape
    D = w.shape[1]
    patches_bf = patches.astype(jnp.bfloat16)
    w_bf = w.astype(jnp.bfloat16)
    return pl.pallas_call(
        patch_embed_kernel,
        out_shape=jax.ShapeDtypeStruct((B, N, D), jnp.float32),
        grid=(B,),
        in_specs=[
            pl.BlockSpec((1, N, P), lambda bi: (bi, 0, 0)),
            _const_spec(w_bf.shape),
            _const_spec(b.shape),
            _const_spec(pos.shape),
        ],
        out_specs=pl.BlockSpec((1, N, D), lambda bi: (bi, 0, 0)),
        compiler_params=pltpu.CompilerParams(
            dimension_semantics=("parallel",),
            vmem_limit_bytes=VMEM_LIMIT),
        cost_estimate=_embed_cost(B, N, P, D),
    )(patches_bf, w_bf, b, pos)


_BLOCK_PARAM_ORDER = ("ln1g", "ln1b", "wqkv", "bqkv", "wproj", "bproj",
                      "ln2g", "ln2b", "wfc1", "bfc1", "wfc2", "bfc2")
_BF16_WEIGHTS = ("wqkv", "wproj", "wfc1", "wfc2")


def run_block(x, blk, norm_g, norm_b, *, num_heads, final_norm):
    B, N, D = x.shape
    M = blk["wfc1"].shape[1]
    weights = [blk[k].astype(jnp.bfloat16) if k in _BF16_WEIGHTS else blk[k]
               for k in _BLOCK_PARAM_ORDER]
    weights += [norm_g, norm_b]          # used only when final_norm=True
    in_specs = [pl.BlockSpec((1, N, D), lambda bi: (bi, 0, 0))]
    in_specs += [_const_spec(w.shape) for w in weights]
    return pl.pallas_call(
        functools.partial(block_kernel, num_heads=num_heads,
                          final_norm=final_norm),
        out_shape=jax.ShapeDtypeStruct((B, N, D), jnp.float32),
        grid=(B,),
        in_specs=in_specs,
        out_specs=pl.BlockSpec((1, N, D), lambda bi: (bi, 0, 0)),
        compiler_params=pltpu.CompilerParams(
            dimension_semantics=("parallel",),
            vmem_limit_bytes=VMEM_LIMIT),
        cost_estimate=_block_cost(B, N, D, num_heads, M),
    )(x, *weights)


def run_final_norm(x, g, b):
    B, N, D = x.shape
    return pl.pallas_call(
        final_norm_kernel,
        out_shape=jax.ShapeDtypeStruct((B, N, D), jnp.float32),
        grid=(B,),
        in_specs=[pl.BlockSpec((1, N, D), lambda bi: (bi, 0, 0)),
                  _const_spec(g.shape), _const_spec(b.shape)],
        out_specs=pl.BlockSpec((1, N, D), lambda bi: (bi, 0, 0)),
        compiler_params=pltpu.CompilerParams(
            dimension_semantics=("parallel",),
            vmem_limit_bytes=VMEM_LIMIT),
    )(x, g, b)


# ----------------------------------------------------------------------------
# glue: patch extraction + full forward
# ----------------------------------------------------------------------------
def extract_patches(x, patch):
    # x: (B, C, H, W)  ->  (B, N, C*patch*patch), ordering matches conv weight.
    B, C, H, W = x.shape
    gh, gw = H // patch, W // patch
    x = x.reshape(B, C, gh, patch, gw, patch)
    x = x.transpose(0, 2, 4, 1, 3, 5)   # (B, gh, gw, C, p, p)
    return x.reshape(B, gh * gw, C * patch * patch)


def vit_adapter_forward(x_img, params, *, patch, num_heads):
    B = x_img.shape[0]
    grid = x_img.shape[2] // patch
    D = params["proj_w"].shape[1]

    patches = extract_patches(x_img, patch)
    tok = run_patch_embed(patches, params["proj_w"], params["proj_b"],
                          params["pos_embed"])
    n_blocks = len(params["blocks"])
    for i, blk in enumerate(params["blocks"]):
        tok = run_block(tok, blk, params["norm_g"], params["norm_b"],
                        num_heads=num_heads, final_norm=(i == n_blocks - 1))
    if n_blocks == 0:
        tok = run_final_norm(tok, params["norm_g"], params["norm_b"])
    # (B, N, D) -> (B, D, grid, grid)
    return tok.transpose(0, 2, 1).reshape(B, D, grid, grid)


# ----------------------------------------------------------------------------
# pure-JAX reference (same math, no Pallas) for correctness check
# ----------------------------------------------------------------------------
def reference_forward(x_img, params, *, patch, num_heads,
                      mm_dtype=jnp.float32):
    B = x_img.shape[0]
    grid = x_img.shape[2] // patch
    D = params["proj_w"].shape[1]
    H = num_heads
    hd = D // H
    scale = 1.0 / float(hd) ** 0.5

    def mm(a, w):
        return jnp.dot(a.astype(mm_dtype), w.astype(mm_dtype),
                       preferred_element_type=jnp.float32)

    patches = extract_patches(x_img, patch)
    x = mm(patches, params["proj_w"]) + params["proj_b"] + params["pos_embed"]
    for p in params["blocks"]:
        h = _layernorm(x, p["ln1g"], p["ln1b"])
        qkv = mm(h, p["wqkv"]) + p["bqkv"]
        q, k, v = qkv[..., :D] * scale, qkv[..., D:2 * D], qkv[..., 2 * D:]

        def split(t):  # (B, N, D) -> (B, N, H, hd)
            return t.reshape(B, -1, H, hd).astype(mm_dtype)

        qh, kh, vh = split(q), split(k), split(v)
        s = jnp.einsum("bnhd,bmhd->bhnm", qh, kh,
                       preferred_element_type=jnp.float32)
        pattn = jax.nn.softmax(s, axis=-1)
        a = jnp.einsum("bhnm,bmhd->bnhd", pattn.astype(mm_dtype), vh,
                       preferred_element_type=jnp.float32)
        a = a.reshape(B, -1, D)
        x = x + mm(a, p["wproj"]) + p["bproj"]
        h2 = _layernorm(x, p["ln2g"], p["ln2b"])
        m = jax.nn.gelu(mm(h2, p["wfc1"]) + p["bfc1"], approximate=False)
        x = x + mm(m, p["wfc2"]) + p["bfc2"]
    x = _layernorm(x, params["norm_g"], params["norm_b"])
    return x.transpose(0, 2, 1).reshape(B, D, grid, grid)


# ----------------------------------------------------------------------------
# deterministic parameter init (synthetic, shapes follow the module)
# ----------------------------------------------------------------------------
def init_params(key, *, in_channels, embed_dim, num_tokens, depth, mlp_hidden):
    P = in_channels * 16 * 16
    keys = jax.random.split(key, 4 + depth)

    def nrm(k, shape, std=0.02):
        return (std * jax.random.normal(k, shape)).astype(jnp.float32)

    params = {
        "proj_w": nrm(keys[0], (P, embed_dim)),            # conv as matmul
        "proj_b": nrm(keys[1], (1, embed_dim)),
        # module stores pos_embed with a cls token and uses pos_embed[:, 1:, :]
        "pos_embed": nrm(keys[2], (num_tokens + 1, embed_dim))[1:, :],
        "norm_g": jnp.ones((1, embed_dim), jnp.float32),
        "norm_b": jnp.zeros((1, embed_dim), jnp.float32),
        "blocks": [],
    }
    for d in range(depth):
        bk = jax.random.split(keys[4 + d], 8)
        params["blocks"].append({
            "ln1g": jnp.ones((1, embed_dim), jnp.float32),
            "ln1b": jnp.zeros((1, embed_dim), jnp.float32),
            "wqkv": nrm(bk[0], (embed_dim, 3 * embed_dim)),
            "bqkv": nrm(bk[1], (1, 3 * embed_dim)),
            "wproj": nrm(bk[2], (embed_dim, embed_dim)),
            "bproj": nrm(bk[3], (1, embed_dim)),
            "ln2g": jnp.ones((1, embed_dim), jnp.float32),
            "ln2b": jnp.zeros((1, embed_dim), jnp.float32),
            "wfc1": nrm(bk[4], (embed_dim, mlp_hidden)),
            "bfc1": nrm(bk[5], (1, mlp_hidden)),
            "wfc2": nrm(bk[6], (mlp_hidden, embed_dim)),
            "bfc2": nrm(bk[7], (1, embed_dim)),
        })
    return params


# ----------------------------------------------------------------------------
if __name__ == "__main__":
    # Small synthetic config consistent with the module (scaled-down ViT).
    # D=128 keeps the output lane-dense (multiple of 128).
    B, C_IN, IMG = 2, 1, 64           # img_size divisible by 16
    PATCH = 16
    GRID = IMG // PATCH               # 4
    N = GRID * GRID                   # 16 tokens
    EMBED = 128
    HEADS = 4
    DEPTH = 2
    MLP_HIDDEN = 4 * EMBED            # mlp_ratio = 4

    key = jax.random.PRNGKey(0)
    k_x, k_p = jax.random.split(key)
    x = jax.random.normal(k_x, (B, C_IN, IMG, IMG), dtype=jnp.float32)
    params = init_params(k_p, in_channels=C_IN, embed_dim=EMBED,
                         num_tokens=N, depth=DEPTH, mlp_hidden=MLP_HIDDEN)

    out = vit_adapter_forward(x, params, patch=PATCH, num_heads=HEADS)
    out = jax.block_until_ready(out)
    assert out.shape == (B, EMBED, GRID, GRID), out.shape

    # bf16-matched reference (same mixed-precision math) -> tight tolerance
    ref_bf = jax.block_until_ready(
        reference_forward(x, params, patch=PATCH, num_heads=HEADS,
                          mm_dtype=jnp.bfloat16))
    err_bf = float(jnp.max(jnp.abs(out - ref_bf)))
    assert err_bf < 3e-2, f"max abs err vs bf16-matched ref {err_bf}"

    # full-f32 reference (module semantics) -> relaxed tolerance for bf16 MXU
    ref_32 = jax.block_until_ready(
        reference_forward(x, params, patch=PATCH, num_heads=HEADS,
                          mm_dtype=jnp.float32))
    err_32 = float(jnp.max(jnp.abs(out - ref_32)))
    assert err_32 < 1.5e-1, f"max abs err vs f32 ref {err_32}"

    print("KERNEL_OK")
</pallas_src>

<mosaic_0001>
module attributes {stable_mosaic.version = 11 : i64} {
  func.func @patch_embed_kernel(%arg0: i32, %arg1: memref<1x16x256xbf16, #tpu.memory_space<vmem>>, %arg2: memref<256x128xbf16, #tpu.memory_space<vmem>>, %arg3: memref<1x128xf32, #tpu.memory_space<vmem>>, %arg4: memref<16x128xf32, #tpu.memory_space<vmem>>, %arg5: memref<1x16x128xf32, #tpu.memory_space<vmem>>) attributes {dimension_semantics = [#tpu.dimension_semantics<parallel>], iteration_bounds = array<i64: 2>, scalar_prefetch = 0 : i64, scratch_operands = 0 : i64, tpu.core_type = #tpu.core_type<tc>, window_params = [{transform_indices = @transform_0, window_bounds = array<i64: 1, 16, 256>}, {pipeline_mode = #tpu.pipeline_mode<synchronous>, transform_indices = @transform_1, window_bounds = array<i64: 256, 128>}, {pipeline_mode = #tpu.pipeline_mode<synchronous>, transform_indices = @transform_2, window_bounds = array<i64: 1, 128>}, {pipeline_mode = #tpu.pipeline_mode<synchronous>, transform_indices = @transform_3, window_bounds = array<i64: 16, 128>}, {transform_indices = @transform_4, window_bounds = array<i64: 1, 16, 128>}]} {
    %c0 = arith.constant 0 : index
    %c0_0 = arith.constant 0 : index
    %c0_1 = arith.constant 0 : index
    %0 = vector.load %arg1[%c0, %c0_0, %c0_1] : memref<1x16x256xbf16, #tpu.memory_space<vmem>>, vector<1x16x256xbf16>
    %1 = vector.shape_cast %0 : vector<1x16x256xbf16> to vector<16x256xbf16>
    %c0_2 = arith.constant 0 : index
    %c0_3 = arith.constant 0 : index
    %2 = vector.load %arg2[%c0_2, %c0_3] : memref<256x128xbf16, #tpu.memory_space<vmem>>, vector<256x128xbf16>
    %cst = arith.constant dense<0.000000e+00> : vector<16x128xf32>
    %3 = tpu.matmul %1, %2, %cst {dimension_numbers = #tpu.dot_dimension_numbers<[1], [0], [0], [1], [0, 0, 1, 1], [], []>} : vector<16x256xbf16>, vector<256x128xbf16>, vector<16x128xf32> -> vector<16x128xf32>
    %c0_4 = arith.constant 0 : index
    %c0_5 = arith.constant 0 : index
    %4 = vector.load %arg3[%c0_4, %c0_5] : memref<1x128xf32, #tpu.memory_space<vmem>>, vector<1x128xf32>
    %5 = vector.broadcast %4 : vector<1x128xf32> to vector<16x128xf32>
    %6 = arith.addf %3, %5 : vector<16x128xf32>
    %c0_6 = arith.constant 0 : index
    %c0_7 = arith.constant 0 : index
    %7 = vector.load %arg4[%c0_6, %c0_7] : memref<16x128xf32, #tpu.memory_space<vmem>>, vector<16x128xf32>
    %8 = arith.addf %6, %7 : vector<16x128xf32>
    %c0_8 = arith.constant 0 : index
    %c0_9 = arith.constant 0 : index
    %c0_10 = arith.constant 0 : index
    %9 = vector.load %arg5[%c0_8, %c0_9, %c0_10] : memref<1x16x128xf32, #tpu.memory_space<vmem>>, vector<1x16x128xf32>
    %10 = vector.shape_cast %9 : vector<1x16x128xf32> to vector<16x128xf32>
    %11 = vector.shape_cast %8 : vector<16x128xf32> to vector<1x16x128xf32>
    tpu.vector_store %arg5[%c0_8, %c0_9, %c0_10], %11 {strides = array<i32>} : memref<1x16x128xf32, #tpu.memory_space<vmem>>, vector<1x16x128xf32>,
    return
  }
  func.func @transform_0(%arg0: i32) -> (i32, i32, i32) {
    %c0_i32 = arith.constant 0 : i32
    %c0_i32_0 = arith.constant 0 : i32
    %c0_i32_1 = arith.constant 0 : i32
    return %arg0, %c0_i32, %c0_i32_0 : i32, i32, i32
  }
  func.func @transform_1(%arg0: i32) -> (i32, i32) {
    %c0_i32 = arith.constant 0 : i32
    %c0_i32_0 = arith.constant 0 : i32
    %c0_i32_1 = arith.constant 0 : i32
    return %c0_i32, %c0_i32_0 : i32, i32
  }
  func.func @transform_2(%arg0: i32) -> (i32, i32) {
    %c0_i32 = arith.constant 0 : i32
    %c0_i32_0 = arith.constant 0 : i32
    %c0_i32_1 = arith.constant 0 : i32
    return %c0_i32, %c0_i32_0 : i32, i32
  }
  func.func @transform_3(%arg0: i32) -> (i32, i32) {
    %c0_i32 = arith.constant 0 : i32
    %c0_i32_0 = arith.constant 0 : i32
    %c0_i32_1 = arith.constant 0 : i32
    return %c0_i32, %c0_i32_0 : i32, i32
  }
  func.func @transform_4(%arg0: i32) -> (i32, i32, i32) {
    %c0_i32 = arith.constant 0 : i32
    %c0_i32_0 = arith.constant 0 : i32
    %c0_i32_1 = arith.constant 0 : i32
    return %arg0, %c0_i32, %c0_i32_0 : i32, i32, i32
  }
}

</mosaic_0001>

<llo_original>
// kernel: tpu_custom_call.1
$region0: #{tpu_custom_call.1}
  #allocation0 [shape = 'u32[]', space=smem, size = 0x4, offset = 0x4, fixed_abs, tag = 'smem constant byte address 0x4 - core index']
  #allocation1 [shape = 'u32[144,128]{1,0:T(1,128)}', space=vmem, size = 0x12000, scoped, tag = 'internal scratch']
  %s0 = inlined_call_operand.hbm [shape: bf16[2,16,256], index: 0, kind: input, shape index: {}]
  %s1 = inlined_call_operand.hbm [shape: bf16[256,128], index: 1, kind: input, shape index: {}]
  %s2 = inlined_call_operand.vmem [shape: f32[1,128], index: 2, kind: input, shape index: {}]
  %s3 = inlined_call_operand.hbm [shape: f32[16,128], index: 3, kind: input, shape index: {}]
  %s4 = inlined_call_operand.hbm [shape: f32[2,16,128], index: 4, kind: output, shape index: {}]
  %s5 = sld [smem:[#allocation0]]
  $region61: #{tpu_custom_call.1} parent=0
    _
  %s7 = ssub.s32 1, %s5
  %s8 = scalar_select 0, %s7, %s5
  $region1: #{tpu_custom_call.1} parent=0
    #allocation2 [shape = 'u8[16384]{0}', space=vmem, size = 0x4000, scoped, tag = 'input window, operand 0']
    #allocation3 [shape = 's32[2]{0}', space=sflag, size = 0x8, scoped, tag = 'scoped memory for tpu_custom_call.1']
    #allocation4 [shape = 's32[2]{0}', space=sflag, size = 0x8, scoped, tag = 'scoped memory for tpu_custom_call.1']
    #allocation5 [shape = 'u8[65536]{0}', space=vmem, size = 0x10000, scoped, tag = 'input window, operand 1, single buffered']
    #allocation6 [shape = 's32[1]{0}', space=sflag, size = 0x4, scoped, tag = 'scoped memory for tpu_custom_call.1']
    #allocation7 [shape = 'u8[8192]{0}', space=vmem, size = 0x2000, scoped, tag = 'input window, operand 3, single buffered']
    #allocation8 [shape = 'u8[16384]{0}', space=vmem, size = 0x4000, scoped, tag = 'output window, operand 0']
    %9 = vsyncpa [#allocation3], 0
    %s10 = scalar_lea.sflag [#allocation3], 1
    %11 = vsyncpa %s10, 0
    %12 = vsyncpa [#allocation6], 0
    %13 = vsyncpa [#allocation4], 0
    %s14 = scalar_lea.sflag [#allocation4], 1
    %15 = vsyncpa %s14, 0
    loop: start=0, step=1, limit=4
    $region2: #{tpu_custom_call.1} parent=1 // loop_pre_header
      _
    $region3: #{tpu_custom_call.1} parent=1 // loop_header
      %s17 = sphi 0, %s21
      %p18 = scmp.ge.s32.totalorder %s17, 4
      %s27 = sphi 0, %s29
      %s30 = sphi 0, %s27
      %s31 = sphi 0, %s30
      %s47 = sphi 0, %s31
      %s51 = sphi 0, %s51
      %s53 = sphi 0, %s51
      %s54 = sphi 0, %s53
      %s68 = sphi 0, %s54
      %s72 = sphi 0, %s72
      %s74 = sphi 0, %s72
      %s75 = sphi 0, %s74
      %s89 = sphi 0, %s75
      %s93 = sphi 0, %s93
      %s95 = sphi 0, %s93
      %s96 = sphi 0, %s95
      %s110 = sphi 0, %s96
      %s116 = sphi 0, %s118
      %s119 = sphi 0, %s116
      %s120 = sphi 0, %s119
      %s136 = sphi 0, %s120
    $region4: #{tpu_custom_call.1} parent=1 // loop_header_branch
      %20 = sbr.rel (%p18) target = $region8
    $region5: #{tpu_custom_call.1} parent=1 // loop_body
      %s22 = ssub.s32 %s17, 1
      %s23 = ssub.s32 %s17, 2
      %s24 = sadd.s32 %s17, 1
      %s25 = ssub.s32 %s17, %s24
      %p26 = scmp.eq.s32.totalorder %s25, 0
      %s28 = sadd.s32 %s27, 1
      %s29 = scalar_select %p26, %s27, %s28
      %p32 = pneg %p26
      %p33 = scmp.eq.s32.totalorder %s17, 1
      %p34 = por %p32, %p33
      %p35 = scmp.ne.s32.totalorder %s27, %s30
      %p36 = scmp.eq.s32.totalorder %s17, 0
      %p37 = por %p35, %p36
      %p38 = scmp.ne.s32.totalorder %s27, %s30
      %p39 = scmp.eq.s32.totalorder %s22, 1
      %p40 = por %p38, %p39
      %p41 = scmp.ne.s32.totalorder %s30, %s31
      %p42 = scmp.eq.s32.totalorder %s22, 0
      %p43 = por %p41, %p42
      %p44 = scmp.ne.s32.totalorder %s30, %s31
      %p45 = scmp.eq.s32.totalorder %s23, 1
      %p46 = por %p44, %p45
      %p48 = scmp.ne.s32.totalorder %s31, %s47
      %p49 = scmp.eq.s32.totalorder %s23, 0
      %p50 = por %p48, %p49
      %s52 = sadd.s32 %s51, 1
      %p55 = scmp.eq.s32.totalorder %s17, 1
      %p56 = scmp.ne.s32.totalorder %s51, %s53
      %p57 = scmp.eq.s32.totalorder %s17, 0
      %p58 = por %p56, %p57
      %p59 = scmp.ne.s32.totalorder %s51, %s53
      %p60 = scmp.eq.s32.totalorder %s22, 1
      %p61 = por %p59, %p60
      %p62 = scmp.ne.s32.totalorder %s53, %s54
      %p63 = scmp.eq.s32.totalorder %s22, 0
      %p64 = por %p62, %p63
      %p65 = scmp.ne.s32.totalorder %s53, %s54
      %p66 = scmp.eq.s32.totalorder %s23, 1
      %p67 = por %p65, %p66
      %p69 = scmp.ne.s32.totalorder %s54, %s68
      %p70 = scmp.eq.s32.totalorder %s23, 0
      %p71 = por %p69, %p70
      %s73 = sadd.s32 %s72, 1
      %p76 = scmp.eq.s32.totalorder %s17, 1
      %p77 = scmp.ne.s32.totalorder %s72, %s74
      %p78 = scmp.eq.s32.totalorder %s17, 0
      %p79 = por %p77, %p78
      %p80 = scmp.ne.s32.totalorder %s72, %s74
      %p81 = scmp.eq.s32.totalorder %s22, 1
      %p82 = por %p80, %p81
      %p83 = scmp.ne.s32.totalorder %s74, %s75
      %p84 = scmp.eq.s32.totalorder %s22, 0
      %p85 = por %p83, %p84
      %p86 = scmp.ne.s32.totalorder %s74, %s75
      %p87 = scmp.eq.s32.totalorder %s23, 1
      %p88 = por %p86, %p87
      %p90 = scmp.ne.s32.totalorder %s75, %s89
      %p91 = scmp.eq.s32.totalorder %s23, 0
      %p92 = por %p90, %p91
      %s94 = sadd.s32 %s93, 1
      %p97 = scmp.eq.s32.totalorder %s17, 1
      %p98 = scmp.ne.s32.totalorder %s93, %s95
      %p99 = scmp.eq.s32.totalorder %s17, 0
      %p100 = por %p98, %p99
      %p101 = scmp.ne.s32.totalorder %s93, %s95
      %p102 = scmp.eq.s32.totalorder %s22, 1
      %p103 = por %p101, %p102
      %p104 = scmp.ne.s32.totalorder %s95, %s96
      %p105 = scmp.eq.s32.totalorder %s22, 0
      %p106 = por %p104, %p105
      %p107 = scmp.ne.s32.totalorder %s95, %s96
      %p108 = scmp.eq.s32.totalorder %s23, 1
      %p109 = por %p107, %p108
      %p111 = scmp.ne.s32.totalorder %s96, %s110
      %p112 = scmp.eq.s32.totalorder %s23, 0
      %p113 = por %p111, %p112
      %s114 = ssub.s32 %s17, %s24
      %p115 = scmp.eq.s32.totalorder %s114, 0
      %s117 = sadd.s32 %s116, 1
      %s118 = scalar_select %p115, %s116, %s117
      %p121 = pneg %p115
      %p122 = scmp.eq.s32.totalorder %s17, 1
      %p123 = por %p121, %p122
      %p124 = scmp.ne.s32.totalorder %s116, %s119
      %p125 = scmp.eq.s32.totalorder %s17, 0
      %p126 = por %p124, %p125
      %p127 = scmp.ne.s32.totalorder %s116, %s119
      %p128 = scmp.eq.s32.totalorder %s22, 1
      %p129 = por %p127, %p128
      %p130 = scmp.ne.s32.totalorder %s119, %s120
      %p131 = scmp.eq.s32.totalorder %s22, 0
      %p132 = por %p130, %p131
      %p133 = scmp.ne.s32.totalorder %s119, %s120
      %p134 = scmp.eq.s32.totalorder %s23, 1
      %p135 = por %p133, %p134
      %p137 = scmp.ne.s32.totalorder %s120, %s136
      %p138 = scmp.eq.s32.totalorder %s23, 0
      %p139 = por %p137, %p138
      %p140 = scmp.le.s32.totalorder 1, %s17
      %p141 = scmp.lt.s32.totalorder %s17, 3
      %p142 = pnand %p140, %p141
      %p143 = pneg %p142
      // Predicated region
      $region9: #{tpu_custom_call.1} parent=5 // pred_check
        _
      $region10: #{tpu_custom_call.1} parent=5 // pred_check_branch
        %145 = sbr.rel (%p142) target = $region12
      $region11: #{tpu_custom_call.1} parent=5 // pred_region
        %s146 = ssub.s32 %s17, 1
        // Predicated region
        $region13: #{tpu_custom_call.1} parent=11 // pred_check
          %p147 = pneg %p64
        $region14: #{tpu_custom_call.1} parent=11 // pred_check_branch
          %149 = sbr.rel (%p147) target = $region16
        $region15: #{tpu_custom_call.1} parent=11 // pred_region
          %s151 = ssub.s32 2048, 2048
          %152 = vsyncadd [#allocation6], %s151
          %s153 = sshll.u32 [#allocation5], 4
          %s154 = int_to_ptr.vmem [resolvable:$true] %s153
          %159 = dma.hbm_to_vmem [thread:$0]  %s1, 2048, %s154, [#allocation6], 64, 64, 4
        $region16: #{tpu_custom_call.1} parent=11 // pred_fallthru
          _
        // Predicated region
        $region17: #{tpu_custom_call.1} parent=11 // pred_check
          %p160 = pneg %p85
        $region18: #{tpu_custom_call.1} parent=11 // pred_check_branch
          %162 = sbr.rel (%p160) target = $region20
        $region19: #{tpu_custom_call.1} parent=11 // pred_region
          _
        $region20: #{tpu_custom_call.1} parent=11 // pred_fallthru
          _
        // Predicated region
        $region21: #{tpu_custom_call.1} parent=11 // pred_check
          %p163 = pneg %p106
        $region22: #{tpu_custom_call.1} parent=11 // pred_check_branch
          %165 = sbr.rel (%p163) target = $region24
        $region23: #{tpu_custom_call.1} parent=11 // pred_region
          %s167 = ssub.s32 256, 256
          %168 = vsyncadd [#allocation6], %s167
          %s169 = sshll.u32 [#allocation7], 4
          %s170 = int_to_ptr.vmem [resolvable:$true] %s169
          %175 = dma.hbm_to_vmem [thread:$0]  %s3, 256, %s170, [#allocation6], 128, 128, 8
        $region24: #{tpu_custom_call.1} parent=11 // pred_fallthru
          _
      $region12: #{tpu_custom_call.1} parent=5 // pred_fallthru
        _
      %p176 = scmp.lt.s32.totalorder %s17, 2
      // Predicated region
      $region25: #{tpu_custom_call.1} parent=5 // pred_check
        %p177 = pneg %p176
      $region26: #{tpu_custom_call.1} parent=5 // pred_check_branch
        %179 = sbr.rel (%p177) target = $region28
      $region27: #{tpu_custom_call.1} parent=5 // pred_region
        // Predicated region
        $region29: #{tpu_custom_call.1} parent=27 // pred_check
          %p180 = pneg %p37
        $region30: #{tpu_custom_call.1} parent=27 // pred_check_branch
          %182 = sbr.rel (%p180) target = $region32
        $region31: #{tpu_custom_call.1} parent=27 // pred_region
          %s183 = sand.u32 %s27, 1
          %s184 = scalar_lea.sflag [#allocation3], %s183
          %s185 = sand.u32 %s27, 1
          %s186 = smul.addr %s185, 16
          %s187 = scalar_lea.vmem [#allocation2], %s186
          %s189 = ssub.s32 256, 256
          %190 = vsyncadd %s184, %s189
          %s191 = smul.addr %s17, 4
          %s192 = smul.addr %s191, 64
          %s193 = scalar_lea.hbm %s0, %s192
          %s194 = sshll.u32 %s187, 4
          %s195 = int_to_ptr.vmem [resolvable:$true] %s194
          %200 = dma.hbm_to_vmem [thread:$0]  %s193, 256, %s195, %s184, 128, 128, 8
        $region32: #{tpu_custom_call.1} parent=27 // pred_fallthru
          _
      $region28: #{tpu_custom_call.1} parent=5 // pred_fallthru
        _
      %p201 = scmp.le.s32.totalorder 1, %s17
      %p202 = scmp.lt.s32.totalorder %s17, 3
      %p203 = pnand %p201, %p202
      %p204 = pneg %p203
      // Predicated region
      $region33: #{tpu_custom_call.1} parent=5 // pred_check
        _
      $region34: #{tpu_custom_call.1} parent=5 // pred_check_branch
        %206 = sbr.rel (%p203) target = $region36
      $region35: #{tpu_custom_call.1} parent=5 // pred_region
        %s207 = ssub.s32 %s17, 1
        %s208 = sand.u32 %s30, 1
        %s209 = scalar_lea.sflag [#allocation3], %s208
        %s210 = sand.u32 %s30, 1
        %s211 = smul.addr %s210, 16
        %s212 = scalar_lea.vmem [#allocation2], %s211
        // Predicated region
        $region37: #{tpu_custom_call.1} parent=35 // pred_check
          %p213 = pneg %p43
        $region38: #{tpu_custom_call.1} parent=35 // pred_check_branch
          %215 = sbr.rel (%p213) target = $region40
        $region39: #{tpu_custom_call.1} parent=35 // pred_region
          %216 = dma.done %s209, 256
        $region40: #{tpu_custom_call.1} parent=35 // pred_fallthru
          _
        // Predicated region
        $region41: #{tpu_custom_call.1} parent=35 // pred_check
          %p217 = pneg %p64
        $region42: #{tpu_custom_call.1} parent=35 // pred_check_branch
          %219 = sbr.rel (%p217) target = $region44
        $region43: #{tpu_custom_call.1} parent=35 // pred_region
          %220 = dma.done [#allocation6], 2048
        $region44: #{tpu_custom_call.1} parent=35 // pred_fallthru
          _
        // Predicated region
        $region45: #{tpu_custom_call.1} parent=35 // pred_check
          %p221 = pneg %p106
        $region46: #{tpu_custom_call.1} parent=35 // pred_check_branch
          %223 = sbr.rel (%p221) target = $region48
        $region47: #{tpu_custom_call.1} parent=35 // pred_region
          %224 = dma.done [#allocation6], 256
        $region48: #{tpu_custom_call.1} parent=35 // pred_fallthru
          _
        %s225 = sand.u32 %s30, 1
        %s226 = scalar_lea.sflag [#allocation3], %s225
        %s227 = sand.u32 %s30, 1
        %s228 = smul.addr %s227, 16
        %s229 = scalar_lea.vmem [#allocation2], %s228
        %p230 = pneg %p43
        %p231 = pneg %p40
        %p232 = pneg %p64
        %p233 = pneg %p61
        %p234 = pneg %p85
        %p235 = pneg %p82
        %p236 = pneg %p106
        %p237 = pneg %p103
        %p238 = pneg %p132
        %p239 = pneg %p129
        %s240 = sand.u32 %s119, 1
        %s241 = scalar_lea.sflag [#allocation4], %s240
        %s242 = sand.u32 %s119, 1
        %s243 = smul.addr %s242, 16
        %s244 = scalar_lea.vmem [#allocation8], %s243
        %v246 = vld [vmem:[%s212] sm:$0xff]
        %v247 = vld [vmem:[%s212 + $0x8] sm:$0xff]
        %v248 = vld [vmem:[#allocation5] sm:$0xf]
        %v249 = vld [vmem:[#allocation5 + $0x4] sm:$0xf]
        %v250 = vld [vmem:[#allocation5 + $0x8] sm:$0xf]
        %v251 = vld [vmem:[#allocation5 + $0xc] sm:$0xf]
        %v252 = vld [vmem:[#allocation5 + $0x10] sm:$0xf]
        %v253 = vld [vmem:[#allocation5 + $0x14] sm:$0xf]
        %v254 = vld [vmem:[#allocation5 + $0x18] sm:$0xf]
        %v255 = vld [vmem:[#allocation5 + $0x1c] sm:$0xf]
        %v256 = vld [vmem:[#allocation5 + $0x20] sm:$0xf]
        %v257 = vld [vmem:[#allocation5 + $0x24] sm:$0xf]
        %v258 = vld [vmem:[#allocation5 + $0x28] sm:$0xf]
        %v259 = vld [vmem:[#allocation5 + $0x2c] sm:$0xf]
        %v260 = vld [vmem:[#allocation5 + $0x30] sm:$0xf]
        %v261 = vld [vmem:[#allocation5 + $0x34] sm:$0xf]
        %v262 = vld [vmem:[#allocation5 + $0x38] sm:$0xf]
        %v263 = vld [vmem:[#allocation5 + $0x3c] sm:$0xf]
        %v264 = vld [vmem:[#allocation5 + $0x40] sm:$0xf]
        %v265 = vld [vmem:[#allocation5 + $0x44] sm:$0xf]
        %v266 = vld [vmem:[#allocation5 + $0x48] sm:$0xf]
        %v267 = vld [vmem:[#allocation5 + $0x4c] sm:$0xf]
        %v268 = vld [vmem:[#allocation5 + $0x50] sm:$0xf]
        %v269 = vld [vmem:[#allocation5 + $0x54] sm:$0xf]
        %v270 = vld [vmem:[#allocation5 + $0x58] sm:$0xf]
        %v271 = vld [vmem:[#allocation5 + $0x5c] sm:$0xf]
        %v272 = vld [vmem:[#allocation5 + $0x60] sm:$0xf]
        %v273 = vld [vmem:[#allocation5 + $0x64] sm:$0xf]
        %v274 = vld [vmem:[#allocation5 + $0x68] sm:$0xf]
        %v275 = vld [vmem:[#allocation5 + $0x6c] sm:$0xf]
        %v276 = vld [vmem:[#allocation5 + $0x70] sm:$0xf]
        %v277 = vld [vmem:[#allocation5 + $0x74] sm:$0xf]
        %v278 = vld [vmem:[#allocation5 + $0x78] sm:$0xf]
        %v279 = vld [vmem:[#allocation5 + $0x7c] sm:$0xf]
        %v280 = vld [vmem:[%s2] sm:$0x1]
        %v282 = vlaneseq
        %v283 = vshrl.u32 %v282, 7
        %v284 = vsub.s32 0, %v283
        %v285 = vrot.slane %v280, %v284
        %v289 = vunpack.c.l.b16 %v246
        %v290 = vunpack.c.h.b16 %v246
        %v291 = vunpack.c.l.b16 %v247
        %v292 = vunpack.c.h.b16 %v247
        %v293 = vpack.c.b16 %v291, %v289
        %v294 = vpack.c.b16 %v292, %v290
        %v329 = vunpack.c.l.b16 %v248
        %v330 = vunpack.c.l.b16 %v249
        %v331 = vunpack.c.l.b16 %v250
        %v332 = vunpack.c.l.b16 %v251
        %v333 = vunpack.c.l.b16 %v252
        %v334 = vunpack.c.l.b16 %v253
        %v335 = vunpack.c.l.b16 %v254
        %v336 = vunpack.c.l.b16 %v255
        %v337 = vunpack.c.l.b16 %v256
        %v338 = vunpack.c.l.b16 %v257
        %v339 = vunpack.c.l.b16 %v258
        %v340 = vunpack.c.l.b16 %v259
        %v341 = vunpack.c.l.b16 %v260
        %v342 = vunpack.c.l.b16 %v261
        %v343 = vunpack.c.l.b16 %v262
        %v344 = vunpack.c.l.b16 %v263
        %v345 = vunpack.c.l.b16 %v264
        %v346 = vunpack.c.l.b16 %v265
        %v347 = vunpack.c.l.b16 %v266
        %v348 = vunpack.c.l.b16 %v267
        %v349 = vunpack.c.l.b16 %v268
        %v350 = vunpack.c.l.b16 %v269
        %v351 = vunpack.c.l.b16 %v270
        %v352 = vunpack.c.l.b16 %v271
        %v353 = vunpack.c.l.b16 %v272
        %v354 = vunpack.c.l.b16 %v273
        %v355 = vunpack.c.l.b16 %v274
        %v356 = vunpack.c.l.b16 %v275
        %v357 = vunpack.c.l.b16 %v276
        %v358 = vunpack.c.l.b16 %v277
        %v359 = vunpack.c.l.b16 %v278
        %v360 = vunpack.c.l.b16 %v279
        %v361 = vpack.c.b16 %v330, %v329
        %v362 = vpack.c.b16 %v332, %v331
        %v363 = vpack.c.b16 %v334, %v333
        %v364 = vpack.c.b16 %v336, %v335
        %v365 = vpack.c.b16 %v338, %v337
        %v366 = vpack.c.b16 %v340, %v339
        %v367 = vpack.c.b16 %v342, %v341
        %v368 = vpack.c.b16 %v344, %v343
        %v369 = vpack.c.b16 %v346, %v345
        %v370 = vpack.c.b16 %v348, %v347
        %v371 = vpack.c.b16 %v350, %v349
        %v372 = vpack.c.b16 %v352, %v351
        %v373 = vpack.c.b16 %v354, %v353
        %v374 = vpack.c.b16 %v356, %v355
        %v375 = vpack.c.b16 %v358, %v357
        %v376 = vpack.c.b16 %v360, %v359
        %393 = vmatprep.subr.bf16.mxu0 0
        %394 = vmatpush1.bf16.msra.mxu0 %v361
        %395 = vmatprep.subr.bf16.mxu0 0
        %396 = vmatpush1.bf16.msra.mxu0 %v362
        %397 = vmatprep.subr.bf16.mxu0 0
        %398 = vmatpush1.bf16.msra.mxu0 %v363
        %399 = vmatprep.subr.bf16.mxu0 0
        %400 = vmatpush1.bf16.msra.mxu0 %v364
        %401 = vmatprep.subr.bf16.mxu0 0
        %402 = vmatpush1.bf16.msra.mxu0 %v365
        %403 = vmatprep.subr.bf16.mxu0 0
        %404 = vmatpush1.bf16.msra.mxu0 %v366
        %405 = vmatprep.subr.bf16.mxu0 0
        %406 = vmatpush1.bf16.msra.mxu0 %v367
        %407 = vmatprep.subr.bf16.mxu0 0
        %408 = vmatpush1.bf16.msra.mxu0 %v368
        %409 = vmatprep.subr.bf16.mxu0 0
        %410 = vmatpush1.bf16.msra.mxu0 %v369
        %411 = vmatprep.subr.bf16.mxu0 0
        %412 = vmatpush1.bf16.msra.mxu0 %v370
        %413 = vmatprep.subr.bf16.mxu0 0
        %414 = vmatpush1.bf16.msra.mxu0 %v371
        %415 = vmatprep.subr.bf16.mxu0 0
        %416 = vmatpush1.bf16.msra.mxu0 %v372
        %417 = vmatprep.subr.bf16.mxu0 0
        %418 = vmatpush1.bf16.msra.mxu0 %v373
        %419 = vmatprep.subr.bf16.mxu0 0
        %420 = vmatpush1.bf16.msra.mxu0 %v374
        %421 = vmatprep.subr.bf16.mxu0 0
        %422 = vmatpush1.bf16.msra.mxu0 %v375
        %423 = vmatprep.subr.bf16.mxu0 0
        %424 = vmatpush1.bf16.msra.mxu0 %v376
        %425 = vmatprep.mubr.bf16.mxu0 %v294
        %426 = vmatmul.mubr.bf16.gmra.mrb[0].mxu0 %v293
        %v427 = vpop.f32.mrb[0].mxu0
        %v428 = vadd.f32 %v285, %v427
        %v429 = vpop.f32.mrb[0].mxu0
        %v430 = vpop.f32.mrb[0].mxu0
        %v431 = vadd.f32 %v285, %v430
        %v432 = vpop.f32.mrb[0].mxu0
        %433 = vdwg.mxu0
        %v434 = vld [vmem:[#allocation7] sm:$0xff]
        %v435 = vld [vmem:[#allocation7 + $0x8] sm:$0xff]
        %v436 = vadd.f32 %v428, %v434
        %v437 = vadd.f32 %v431, %v435
        %438 = vst [vmem:[%s244] sm:$0xff] %v436
        %439 = vst [vmem:[%s244 + $0x8] sm:$0xff] %v437
        %s440 = sand.u32 %s119, 1
        %s441 = scalar_lea.sflag [#allocation4], %s440
        %s442 = sand.u32 %s119, 1
        %s443 = smul.addr %s442, 16
        %s444 = scalar_lea.vmem [#allocation8], %s443
        // Predicated region
        $region49: #{tpu_custom_call.1} parent=35 // pred_check
          %p445 = pneg %p129
        $region50: #{tpu_custom_call.1} parent=35 // pred_check_branch
          %447 = sbr.rel (%p445) target = $region52
        $region51: #{tpu_custom_call.1} parent=35 // pred_region
          %s449 = ssub.s32 256, 256
          %450 = vsyncadd %s441, %s449
          %s451 = smul.addr %s22, 2
          %s452 = smul.addr %s451, 128
          %s453 = scalar_lea.hbm %s4, %s452
          %s454 = sshll.u32 %s444, 4
          %s455 = int_to_ptr.vmem [resolvable:$true] %s454
          %460 = dma.vmem_to_hbm [thread:$0]  %s455, 256, %s453, %s441, 128, 128, 8
        $region52: #{tpu_custom_call.1} parent=35 // pred_fallthru
          _
      $region36: #{tpu_custom_call.1} parent=5 // pred_fallthru
        _
      %p461 = scmp.le.s32.totalorder 2, %s17
      // Predicated region
      $region53: #{tpu_custom_call.1} parent=5 // pred_check
        %p462 = pneg %p461
      $region54: #{tpu_custom_call.1} parent=5 // pred_check_branch
        %464 = sbr.rel (%p462) target = $region56
      $region55: #{tpu_custom_call.1} parent=5 // pred_region
        %s465 = ssub.s32 %s17, 2
        // Predicated region
        $region57: #{tpu_custom_call.1} parent=55 // pred_check
          %p466 = pneg %p135
        $region58: #{tpu_custom_call.1} parent=55 // pred_check_branch
          %468 = sbr.rel (%p466) target = $region60
        $region59: #{tpu_custom_call.1} parent=55 // pred_region
          %s469 = sand.u32 %s120, 1
          %s470 = scalar_lea.sflag [#allocation4], %s469
          %s471 = sand.u32 %s120, 1
          %s472 = smul.addr %s471, 16
          %s473 = scalar_lea.vmem [#allocation8], %s472
          %474 = dma.done %s470, 256
        $region60: #{tpu_custom_call.1} parent=55 // pred_fallthru
          _
      $region56: #{tpu_custom_call.1} parent=5 // pred_fallthru
        _
    $region6: #{tpu_custom_call.1} parent=1 // loop_footer
      %s21 = sadd.s32 1, %s17
    $region7: #{tpu_custom_call.1} parent=1 // loop_footer_branch
      %16 = sbr.rel target = $region3
    $region8: #{tpu_custom_call.1} parent=1 // loop_exit
      _
    %475 = vsyncpa [#allocation3], 1
    %s476 = scalar_lea.sflag [#allocation3], 1
    %477 = vsyncpa %s476, 1
    %478 = vsyncpa [#allocation6], 1
    %479 = vsyncpa [#allocation4], 1
    %s480 = scalar_lea.sflag [#allocation4], 1
    %481 = vsyncpa %s480, 1

</llo_original>
